<compile_context>
chip_gen: v7x
topology: tpu7x:2x2x1
jax: 0.10.0
libtpu: 0.0.40
codegen_flags: <defaults>
</compile_context>

<pallas_src>
import jax
import jax.numpy as jnp
from jax.experimental import pallas as pl
from jax.experimental.pallas import tpu as pltpu


def _round_up(x, m):
    return (x + m - 1) // m * m


# ------------------------------- TAG loss -----------------------------------


def _tag_loss_kernel(mask_ref, w_ref, out_ref, num_acc, den_acc):
    t = pl.program_id(1)

    @pl.when(t == 0)
    def _():
        num_acc[...] = jnp.zeros_like(num_acc)
        den_acc[...] = jnp.zeros_like(den_acc)

    # Upcast (no-op for f32; halves HBM traffic when bf16 inputs are used).
    # The 1e-8 epsilon must be added after the upcast so it is not lost.
    mask = mask_ref[...].astype(jnp.float32)                  # (TB, TT)
    w = w_ref[...].astype(jnp.float32)                        # (TB, TT)

    neg_log = -mask * jnp.log(w + 1e-8)                       # VPU mul + 1 EUP log
    num_acc[...] += jnp.sum(neg_log, axis=1, keepdims=True)   # XLU lane reductions
    den_acc[...] += jnp.sum(mask, axis=1, keepdims=True)

    @pl.when(t == pl.num_programs(1) - 1)
    def _():
        per_row = num_acc[...] / den_acc[...]                 # (TB, 1), O(TB)
        out_ref[...] = jnp.broadcast_to(per_row, out_ref.shape)


def tag_loss(mask, w):
    """mask, w: (B, T) float32/bfloat16. Returns scalar f32 TAG loss."""
    assert mask.shape == w.shape and mask.ndim == 2
    B, T = mask.shape

    TB = min(_round_up(B, 8), 256)      # sublane tile (batch)
    TT = min(_round_up(T, 128), 2048)   # lane tile (tag/reduction axis)
    B_pad = _round_up(B, TB)
    T_pad = _round_up(T, TT)

    if (B_pad, T_pad) != (B, T):
        # mask pads with 0 (zero contribution to num and den); w pads with 1 so
        # the log stays finite. Padded batch rows are sliced off before the mean.
        mask = jnp.pad(mask, ((0, B_pad - B), (0, T_pad - T)))
        w = jnp.pad(w, ((0, B_pad - B), (0, T_pad - T)), constant_values=1.0)

    grid = (B_pad // TB, T_pad // TT)

    per_row = pl.pallas_call(
        _tag_loss_kernel,
        out_shape=jax.ShapeDtypeStruct((B_pad, 128), jnp.float32),
        grid_spec=pltpu.PrefetchScalarGridSpec(
            num_scalar_prefetch=0,
            grid=grid,
            in_specs=[
                pl.BlockSpec((TB, TT), lambda i, t: (i, t)),
                pl.BlockSpec((TB, TT), lambda i, t: (i, t)),
            ],
            out_specs=pl.BlockSpec((TB, 128), lambda i, t: (i, 0)),
            scratch_shapes=[
                pltpu.VMEM((TB, 1), jnp.float32),   # num accumulator
                pltpu.VMEM((TB, 1), jnp.float32),   # den accumulator
            ],
        ),
        compiler_params=pltpu.CompilerParams(
            dimension_semantics=("parallel", "arbitrary"),
            vmem_limit_bytes=32 * 1024 * 1024,
        ),
    )(mask, w)

    # Tiny O(B) finalization outside the kernel: keeps the B grid axis parallel
    # (both v7x TensorCores usable) instead of a serial scalar accumulator.
    # Note: rows with mask.sum(1) == 0 give inf/nan, matching PyTorch (no guard
    # in the reference either).
    return 1.0 * jnp.mean(per_row[:B, 0])


# ------------------------- grounding (SmoothL1) ------------------------------


def _smooth_l1_kernel(loc_ref, gt_ref, out_ref):
    d = loc_ref[...].astype(jnp.float32) - gt_ref[...].astype(jnp.float32)
    ad = jnp.abs(d)
    out_ref[...] = jnp.where(ad < 1.0, 0.5 * d * d, ad - 0.5)


def grounding_loss(loc, s_gt, e_gt):
    """loc: (B, 2); s_gt, e_gt: (B,). SmoothL1(loc[:,0],s) + SmoothL1(loc[:,1],e)."""
    gt = jnp.stack([s_gt, e_gt], axis=1)                      # (B, 2)
    elems = pl.pallas_call(
        _smooth_l1_kernel,
        out_shape=jax.ShapeDtypeStruct(loc.shape, jnp.float32),
        in_specs=[
            pl.BlockSpec(memory_space=pltpu.MemorySpace.VMEM),
            pl.BlockSpec(memory_space=pltpu.MemorySpace.VMEM),
        ],
        out_specs=pl.BlockSpec(memory_space=pltpu.MemorySpace.VMEM),
    )(loc, gt)
    # O(B) means outside the kernel (inputs are tiny: B x 2 elements).
    return jnp.mean(elems[:, 0]) + jnp.mean(elems[:, 1])


# --------------------------------- LOSS --------------------------------------


def loss_forward(net_outs, gts):
    g = grounding_loss(net_outs["grounding_loc"],
                       gts["grounding_start_pos"],
                       gts["grounding_end_pos"])
    t = tag_loss(gts["tag_att_masks"], net_outs["tag_attw"])
    return g + t


def loss_ref(net_outs, gts):
    mask = gts["tag_att_masks"].astype(jnp.float32)
    w = net_outs["tag_attw"].astype(jnp.float32)
    tag = jnp.mean(jnp.sum(-mask * jnp.log(w + 1e-8), axis=1)
                   / jnp.sum(mask, axis=1))

    def smooth_l1(x, y):
        d = x - y
        ad = jnp.abs(d)
        return jnp.mean(jnp.where(ad < 1.0, 0.5 * d * d, ad - 0.5))

    loc = net_outs["grounding_loc"]
    g = (smooth_l1(loc[:, 0], gts["grounding_start_pos"])
         + smooth_l1(loc[:, 1], gts["grounding_end_pos"]))
    return g + tag


if __name__ == "__main__":
    key = jax.random.PRNGKey(0)
    B, T = 2, 8
    k_mask, k_w, k_loc, k_s, k_e = jax.random.split(key, 5)

    # Binary tag attention mask; force at least one active position per row so
    # mask.sum(1) is never zero (a valid TAG ground-truth mask).
    mask = (jax.random.uniform(k_mask, (B, T)) > 0.5).astype(jnp.float32)
    mask = mask.at[:, 0].set(1.0)
    # Attention weights: softmax over the tag axis.
    w = jax.nn.softmax(jax.random.normal(k_w, (B, T), dtype=jnp.float32), axis=1)

    loc = jax.random.uniform(k_loc, (B, 2), dtype=jnp.float32)
    s_gt = jax.random.uniform(k_s, (B,), dtype=jnp.float32)
    e_gt = jax.random.uniform(k_e, (B,), dtype=jnp.float32)

    net_outs = {"tag_attw": w, "grounding_loc": loc}
    gts = {"tag_att_masks": mask,
           "grounding_start_pos": s_gt,
           "grounding_end_pos": e_gt}

    total = jax.block_until_ready(loss_forward(net_outs, gts))
    ref = jax.block_until_ready(loss_ref(net_outs, gts))

    assert jnp.allclose(total, ref, rtol=1e-5, atol=1e-5), (total, ref)
    print("KERNEL_OK")
</pallas_src>

<mosaic_0001>
module attributes {stable_mosaic.version = 11 : i64} {
  func.func @_smooth_l1_kernel(%arg0: memref<2x2xf32, #tpu.memory_space<vmem>>, %arg1: memref<2x2xf32, #tpu.memory_space<vmem>>, %arg2: memref<2x2xf32, #tpu.memory_space<vmem>>) attributes {dimension_semantics = [], scalar_prefetch = 0 : i64, scratch_operands = 0 : i64, tpu.core_type = #tpu.core_type<tc>} {
    %c0 = arith.constant 0 : index
    %c0_0 = arith.constant 0 : index
    %0 = vector.load %arg0[%c0, %c0_0] : memref<2x2xf32, #tpu.memory_space<vmem>>, vector<2x2xf32>
    %c0_1 = arith.constant 0 : index
    %c0_2 = arith.constant 0 : index
    %1 = vector.load %arg1[%c0_1, %c0_2] : memref<2x2xf32, #tpu.memory_space<vmem>>, vector<2x2xf32>
    %2 = arith.subf %0, %1 : vector<2x2xf32>
    %3 = math.absf %2 : vector<2x2xf32>
    %cst = arith.constant 1.000000e+00 : f32
    %4 = vector.broadcast %cst : f32 to vector<2x2xf32>
    %5 = arith.cmpf olt, %3, %4 : vector<2x2xf32>
    %cst_3 = arith.constant 5.000000e-01 : f32
    %6 = vector.broadcast %cst_3 : f32 to vector<2x2xf32>
    %7 = arith.mulf %6, %2 : vector<2x2xf32>
    %8 = arith.mulf %7, %2 : vector<2x2xf32>
    %cst_4 = arith.constant 5.000000e-01 : f32
    %9 = vector.broadcast %cst_4 : f32 to vector<2x2xf32>
    %10 = arith.subf %3, %9 : vector<2x2xf32>
    %11 = arith.select %5, %8, %10 : vector<2x2xi1>, vector<2x2xf32>
    %c0_5 = arith.constant 0 : index
    %c0_6 = arith.constant 0 : index
    %12 = vector.load %arg2[%c0_5, %c0_6] : memref<2x2xf32, #tpu.memory_space<vmem>>, vector<2x2xf32>
    tpu.vector_store %arg2[%c0_5, %c0_6], %11 {strides = array<i32>} : memref<2x2xf32, #tpu.memory_space<vmem>>, vector<2x2xf32>,
    return
  }
}

</mosaic_0001>

<llo_original>
// kernel: tpu_custom_call.1
$region0: #{tpu_custom_call.1}
  #allocation0 [shape = 'u32[]', space=smem, size = 0x4, offset = 0x4, fixed_abs, tag = 'smem constant byte address 0x4 - core index']
  #allocation1 [shape = 'u32[144,128]{1,0:T(1,128)}', space=vmem, size = 0x12000, scoped, tag = 'internal scratch']
  %s0 = inlined_call_operand.hbm [shape: f32[2,2], index: 0, kind: input, shape index: {}]
  %s1 = inlined_call_operand.vmem [shape: f32[2,2], index: 1, kind: input, shape index: {}]
  %s2 = inlined_call_operand.hbm [shape: f32[2,2], index: 2, kind: output, shape index: {}]
  %s3 = sld [smem:[#allocation0]]
  $region22: #{tpu_custom_call.1} parent=0
    _
  %s5 = ssub.s32 1, %s3
  %s6 = scalar_select 0, %s5, %s3
  $region1: #{tpu_custom_call.1} parent=0
    #allocation2 [shape = 'u8[1024]{0}', space=vmem, size = 0x400, scoped, tag = 'input window, operand 0, single buffered']
    #allocation3 [shape = 's32[1]{0}', space=sflag, size = 0x4, scoped, tag = 'scoped memory for tpu_custom_call.1']
    #allocation4 [shape = 's32[1]{0}', space=sflag, size = 0x4, scoped, tag = 'scoped memory for tpu_custom_call.1']
    #allocation5 [shape = 'u8[1024]{0}', space=vmem, size = 0x400, scoped, tag = 'output window, operand 0, single buffered']
    %7 = vsyncpa [#allocation3], 0
    %8 = vsyncpa [#allocation4], 0
    // Predicated region
    $region2: #{tpu_custom_call.1} parent=1 // pred_check
      _
    $region3: #{tpu_custom_call.1} parent=1 // pred_check_branch
      %10 = sbr.rel (0) target = $region5
    $region4: #{tpu_custom_call.1} parent=1 // pred_region
      %s12 = ssub.s32 32, 32
      %13 = vsyncadd [#allocation3], %s12
      %s15 = sshll.u32 [#allocation2], 4
      %s16 = int_to_ptr.vmem [resolvable:$true] %s15
      %18 = dma.hbm_to_vmem [thread:$0]  %s0, 32, %s16, [#allocation3]
    $region5: #{tpu_custom_call.1} parent=1 // pred_fallthru
      _
    // Predicated region
    $region6: #{tpu_custom_call.1} parent=1 // pred_check
      _
    $region7: #{tpu_custom_call.1} parent=1 // pred_check_branch
      %20 = sbr.rel (0) target = $region9
    $region8: #{tpu_custom_call.1} parent=1 // pred_region
      _
    $region9: #{tpu_custom_call.1} parent=1 // pred_fallthru
      _
    // Predicated region
    $region10: #{tpu_custom_call.1} parent=1 // pred_check
      _
    $region11: #{tpu_custom_call.1} parent=1 // pred_check_branch
      %22 = sbr.rel (0) target = $region13
    $region12: #{tpu_custom_call.1} parent=1 // pred_region
      %23 = dma.done [#allocation3], 32
    $region13: #{tpu_custom_call.1} parent=1 // pred_fallthru
      _
    %v24 = vld [vmem:[#allocation2] sm:$0x3]
    %v25 = vld [vmem:[%s1] sm:$0x3]
    %v26 = vsub.f32 %v24, %v25
    %v27 = vand.u32 2147483647, %v26
    %vm28 = vcmp.lt.f32.partialorder %v27, 1.0
    %v29 = vmul.f32 %v26, 0.5
    %v30 = vmul.f32 %v29, %v26
    %v31 = vsub.f32 %v27, 0.5
    %v32 = vsel %vm28, %v30, %v31
    %vm33 = vcmask 9216
    %34 = vst.msk [vmem:[#allocation5] sm:$0x3] %vm33, %v32
    // Predicated region
    $region14: #{tpu_custom_call.1} parent=1 // pred_check
      _
    $region15: #{tpu_custom_call.1} parent=1 // pred_check_branch
      %36 = sbr.rel (0) target = $region17
    $region16: #{tpu_custom_call.1} parent=1 // pred_region
      %s38 = ssub.s32 32, 32
      %39 = vsyncadd [#allocation4], %s38
      %s41 = sshll.u32 [#allocation5], 4
      %s42 = int_to_ptr.vmem [resolvable:$true] %s41
      %44 = dma.vmem_to_hbm [thread:$0]  %s42, 32, %s2, [#allocation4]
    $region17: #{tpu_custom_call.1} parent=1 // pred_fallthru
      _
    // Predicated region
    $region18: #{tpu_custom_call.1} parent=1 // pred_check
      _
    $region19: #{tpu_custom_call.1} parent=1 // pred_check_branch
      %46 = sbr.rel (0) target = $region21
    $region20: #{tpu_custom_call.1} parent=1 // pred_region
      %47 = dma.done [#allocation4], 32
    $region21: #{tpu_custom_call.1} parent=1 // pred_fallthru
      _
    %48 = vsyncpa [#allocation3], 1
    %49 = vsyncpa [#allocation4], 1

</llo_original>
